<compile_context>
chip_gen: v5e
topology: v5e:2x2
jax: 0.10.0
libtpu: 0.0.40
codegen_flags: <defaults>
</compile_context>

<pallas_src>
import jax
import jax.numpy as jnp
from jax.experimental import pallas as pl
from jax.experimental.pallas import tpu as pltpu


def _round_up(x: int, m: int) -> int:
    return ((x + m - 1) // m) * m


def _clustering_kernel(alpha: float, power: float, k_valid: int):
    inv_alpha = 1.0 / alpha

    def kernel(z_ref, ct_ref, cc_ref, o_ref):
        z = z_ref[...]                                  # (TILE_B, D), input dtype
        ct = ct_ref[...]                                # (D, K_pad), input dtype
        cc = cc_ref[...].astype(jnp.float32)            # (1, K_pad) precomputed ||c||^2

        # Cross term on the MXU with f32 accumulation.
        cross = jnp.dot(z, ct, preferred_element_type=jnp.float32)  # (TILE_B, K_pad)

        # ||z||^2 per row (lane reduction over D).
        zf = z.astype(jnp.float32)
        zz = jnp.sum(zf * zf, axis=1, keepdims=True)    # (TILE_B, 1)

        # Squared Euclidean distances, clamped, then sqrt (matches torch.cdist p=2).
        d2 = jnp.maximum(zz - 2.0 * cross + cc, 0.0)
        dists = jnp.sqrt(d2)                            # (TILE_B, K_pad)

        # Student-t style similarity. alpha=1 -> exponent -1 -> single EUP recip.
        base = 1.0 + dists * inv_alpha
        if power == -1.0:
            sim = pl.reciprocal(base, approx=False)
        else:
            sim = jnp.power(base, power)

        # Mask padded centroid columns BEFORE normalization.
        k_pad = sim.shape[-1]
        if k_valid < k_pad:
            col = jax.lax.broadcasted_iota(jnp.int32, sim.shape, 1)
            sim = jnp.where(col < k_valid, sim, 0.0)

        norm = jnp.sum(sim, axis=1, keepdims=True)      # (TILE_B, 1)
        o_ref[...] = (sim * pl.reciprocal(norm, approx=False)).astype(o_ref.dtype)

    return kernel


def clustering_forward(x, centroids, alpha: float, *, max_tile_b: int = 512):
    """x: (B, ...) any trailing shape; centroids: (K, D). Returns (B, K) soft assignments."""
    B = x.shape[0]
    z2d = x.reshape(B, -1)                              # torch.flatten(start_dim=1); dtype preserved
    K, D = centroids.shape
    assert z2d.shape[1] == D, "flattened feature dim must match centroid dim"

    power = -(alpha + 1.0) / 2.0
    K_pad = _round_up(K, 128)                           # lane-dense cluster dim

    # Centroid glue (plain JAX, done once): transpose to (D, K_pad) zero-padded,
    # and hoist the per-centroid norm ||c||^2 out of the kernel.
    ct = jnp.zeros((D, K_pad), dtype=centroids.dtype).at[:, :K].set(
        jnp.transpose(centroids))
    cc = jnp.zeros((1, K_pad), dtype=jnp.float32).at[:, :K].set(
        jnp.sum(centroids.astype(jnp.float32) ** 2, axis=1)[None, :])

    # Batch tile: multiple of 8 sublanes; cap so each double-buffered z tile
    # stays ~<=4 MiB (safe on v5e 16 MiB / v6e 32 MiB / v7x 64 MiB scoped VMEM).
    itemsize = jnp.dtype(z2d.dtype).itemsize
    vmem_cap_rows = max(8, (4 * 1024 * 1024) // max(1, D * itemsize))
    tile_b = min(max_tile_b, _round_up(B, 8), _round_up(vmem_cap_rows, 8))
    tile_b = max(8, (tile_b // 8) * 8)

    B_pad = _round_up(B, tile_b)
    if B_pad != B:
        z2d = jnp.zeros((B_pad, D), dtype=z2d.dtype).at[:B].set(z2d)

    grid = (B_pad // tile_b,)
    out = pl.pallas_call(
        _clustering_kernel(float(alpha), float(power), K),
        out_shape=jax.ShapeDtypeStruct((B_pad, K_pad), jnp.float32),
        grid=grid,
        in_specs=[
            pl.BlockSpec((tile_b, D), lambda i: (i, 0)),   # z tile, pipelined over batch
            pl.BlockSpec((D, K_pad), lambda i: (0, 0)),    # centroids: resident
            pl.BlockSpec((1, K_pad), lambda i: (0, 0)),    # ||c||^2: resident
        ],
        out_specs=pl.BlockSpec((tile_b, K_pad), lambda i: (i, 0)),
        compiler_params=pltpu.CompilerParams(
            dimension_semantics=("parallel",),             # v7x: shard grid over both TCs
        ),
    )(z2d, ct, cc)

    return out[:B, :K]


if __name__ == "__main__":
    # Small, deterministic config consistent with the module.
    B, C, H, W = 2, 4, 16, 16
    D = C * H * W            # input_size[0] == flattened feature dim
    n_clusters = 10
    alpha = 1.0

    key = jax.random.PRNGKey(0)
    kx, kc = jax.random.split(key)

    x = jax.random.normal(kx, (B, C, H, W), dtype=jnp.float32)
    # centroids ~ Normal(0, 1), shape (n_clusters, D)  (mirrors th.normal init)
    centroids = jax.random.normal(kc, (n_clusters, D), dtype=jnp.float32)

    sim = clustering_forward(x, centroids, alpha)
    sim = jax.block_until_ready(sim)

    # Pure-JAX reference check (same math, no Pallas) for sanity.
    z2d = x.reshape(B, -1)
    d = jnp.sqrt(
        jnp.maximum(
            jnp.sum(z2d * z2d, axis=1, keepdims=True)
            - 2.0 * z2d @ centroids.T
            + jnp.sum(centroids * centroids, axis=1)[None, :],
            0.0,
        )
    )
    ref = (1.0 + d / alpha) ** (-(alpha + 1.0) / 2.0)
    ref = ref / jnp.sum(ref, axis=1, keepdims=True)
    assert sim.shape == (B, n_clusters)
    assert jnp.allclose(sim, ref, atol=1e-5, rtol=1e-5)
    assert jnp.allclose(jnp.sum(sim, axis=1), 1.0, atol=1e-5)

    print("KERNEL_OK")
</pallas_src>

<mosaic_0001>
module attributes {stable_mosaic.version = 11 : i64} {
  func.func @kernel(%arg0: i32, %arg1: memref<8x1024xf32, #tpu.memory_space<vmem>>, %arg2: memref<1024x128xf32, #tpu.memory_space<vmem>>, %arg3: memref<1x128xf32, #tpu.memory_space<vmem>>, %arg4: memref<8x128xf32, #tpu.memory_space<vmem>>) attributes {dimension_semantics = [#tpu.dimension_semantics<parallel>], iteration_bounds = array<i64: 1>, scalar_prefetch = 0 : i64, scratch_operands = 0 : i64, tpu.core_type = #tpu.core_type<tc>, window_params = [{transform_indices = @transform_0, window_bounds = array<i64: 8, 1024>}, {pipeline_mode = #tpu.pipeline_mode<synchronous>, transform_indices = @transform_1, window_bounds = array<i64: 1024, 128>}, {pipeline_mode = #tpu.pipeline_mode<synchronous>, transform_indices = @transform_2, window_bounds = array<i64: 1, 128>}, {transform_indices = @transform_3, window_bounds = array<i64: 8, 128>}]} {
    %c0 = arith.constant 0 : index
    %c0_0 = arith.constant 0 : index
    %0 = vector.load %arg1[%c0, %c0_0] : memref<8x1024xf32, #tpu.memory_space<vmem>>, vector<8x1024xf32>
    %c0_1 = arith.constant 0 : index
    %c0_2 = arith.constant 0 : index
    %1 = vector.load %arg2[%c0_1, %c0_2] : memref<1024x128xf32, #tpu.memory_space<vmem>>, vector<1024x128xf32>
    %c0_3 = arith.constant 0 : index
    %c0_4 = arith.constant 0 : index
    %2 = vector.load %arg3[%c0_3, %c0_4] : memref<1x128xf32, #tpu.memory_space<vmem>>, vector<1x128xf32>
    %cst = arith.constant dense<0.000000e+00> : vector<8x128xf32>
    %3 = tpu.matmul %0, %1, %cst {dimension_numbers = #tpu.dot_dimension_numbers<[1], [0], [0], [1], [0, 0, 1, 1], [], []>} : vector<8x1024xf32>, vector<1024x128xf32>, vector<8x128xf32> -> vector<8x128xf32>
    %4 = arith.mulf %0, %0 : vector<8x1024xf32>
    %cst_5 = arith.constant dense<0.000000e+00> : vector<8xf32>
    %5 = vector.multi_reduction <add>, %4, %cst_5 [1] : vector<8x1024xf32> to vector<8xf32>
    %6 = vector.shape_cast %5 : vector<8xf32> to vector<8x1xf32>
    %cst_6 = arith.constant 2.000000e+00 : f32
    %7 = vector.broadcast %cst_6 : f32 to vector<8x128xf32>
    %8 = arith.mulf %7, %3 : vector<8x128xf32>
    %9 = vector.broadcast %6 : vector<8x1xf32> to vector<8x128xf32>
    %10 = arith.subf %9, %8 : vector<8x128xf32>
    %11 = vector.broadcast %2 : vector<1x128xf32> to vector<8x128xf32>
    %12 = arith.addf %10, %11 : vector<8x128xf32>
    %cst_7 = arith.constant 0.000000e+00 : f32
    %13 = vector.broadcast %cst_7 : f32 to vector<8x128xf32>
    %14 = arith.maximumf %12, %13 : vector<8x128xf32>
    %15 = math.sqrt %14 : vector<8x128xf32>
    %cst_8 = arith.constant 1.000000e+00 : f32
    %16 = vector.broadcast %cst_8 : f32 to vector<8x128xf32>
    %17 = arith.mulf %15, %16 : vector<8x128xf32>
    %cst_9 = arith.constant 1.000000e+00 : f32
    %18 = vector.broadcast %cst_9 : f32 to vector<8x128xf32>
    %19 = arith.addf %18, %17 : vector<8x128xf32>
    %20 = tpu.reciprocal %19 : vector<8x128xf32> -> vector<8x128xf32>
    %21 = tpu.iota {dimensions = array<i32: 1>} : vector<8x128xi32>
    %c10_i32 = arith.constant 10 : i32
    %22 = vector.broadcast %c10_i32 : i32 to vector<8x128xi32>
    %23 = arith.cmpi slt, %21, %22 : vector<8x128xi32>
    %cst_10 = arith.constant 0.000000e+00 : f32
    %24 = vector.broadcast %cst_10 : f32 to vector<8x128xf32>
    %25 = arith.select %23, %20, %24 : vector<8x128xi1>, vector<8x128xf32>
    %cst_11 = arith.constant dense<0.000000e+00> : vector<8xf32>
    %26 = vector.multi_reduction <add>, %25, %cst_11 [1] : vector<8x128xf32> to vector<8xf32>
    %27 = vector.shape_cast %26 : vector<8xf32> to vector<8x1xf32>
    %28 = tpu.reciprocal %27 : vector<8x1xf32> -> vector<8x1xf32>
    %29 = vector.broadcast %28 : vector<8x1xf32> to vector<8x128xf32>
    %30 = arith.mulf %25, %29 : vector<8x128xf32>
    %c0_12 = arith.constant 0 : index
    %c0_13 = arith.constant 0 : index
    %31 = vector.load %arg4[%c0_12, %c0_13] : memref<8x128xf32, #tpu.memory_space<vmem>>, vector<8x128xf32>
    tpu.vector_store %arg4[%c0_12, %c0_13], %30 {strides = array<i32>} : memref<8x128xf32, #tpu.memory_space<vmem>>, vector<8x128xf32>,
    return
  }
  func.func @transform_0(%arg0: i32) -> (i32, i32) {
    %c0_i32 = arith.constant 0 : i32
    %c0_i32_0 = arith.constant 0 : i32
    return %arg0, %c0_i32 : i32, i32
  }
  func.func @transform_1(%arg0: i32) -> (i32, i32) {
    %c0_i32 = arith.constant 0 : i32
    %c0_i32_0 = arith.constant 0 : i32
    %c0_i32_1 = arith.constant 0 : i32
    return %c0_i32, %c0_i32_0 : i32, i32
  }
  func.func @transform_2(%arg0: i32) -> (i32, i32) {
    %c0_i32 = arith.constant 0 : i32
    %c0_i32_0 = arith.constant 0 : i32
    %c0_i32_1 = arith.constant 0 : i32
    return %c0_i32, %c0_i32_0 : i32, i32
  }
  func.func @transform_3(%arg0: i32) -> (i32, i32) {
    %c0_i32 = arith.constant 0 : i32
    %c0_i32_0 = arith.constant 0 : i32
    return %arg0, %c0_i32 : i32, i32
  }
}

</mosaic_0001>

<llo_original>
// kernel: tpu_custom_call.1
$region0: #{tpu_custom_call.1}
  #allocation0 [shape = 'u32[]', space=smem, size = 0x4, offset = 0x4, fixed_abs, tag = 'smem constant byte address 0x4 - core index']
  #allocation1 [shape = 'u32[72,128]{1,0:T(1,128)}', space=vmem, size = 0x9000, scoped, tag = 'internal scratch']
  %s0 = inlined_call_operand.hbm [shape: f32[8,1024], index: 0, kind: input, shape index: {}]
  %s1 = inlined_call_operand.hbm [shape: f32[1024,128], index: 1, kind: input, shape index: {}]
  %s2 = inlined_call_operand.vmem [shape: f32[1,128], index: 2, kind: input, shape index: {}]
  %s3 = inlined_call_operand.hbm [shape: f32[8,128], index: 3, kind: output, shape index: {}]
  %s4 = sld [smem:[#allocation0]]
  $region30: #{tpu_custom_call.1} parent=0
    _
  %s6 = ssub.s32 1, %s4
  %s7 = scalar_select 0, %s6, %s4
  $region1: #{tpu_custom_call.1} parent=0
    #allocation2 [shape = 'u8[32768]{0}', space=vmem, size = 0x8000, scoped, tag = 'input window, operand 0, single buffered']
    #allocation3 [shape = 's32[1]{0}', space=sflag, size = 0x4, scoped, tag = 'scoped memory for tpu_custom_call.1']
    #allocation4 [shape = 's32[1]{0}', space=sflag, size = 0x4, scoped, tag = 'scoped memory for tpu_custom_call.1']
    #allocation5 [shape = 'u8[524288]{0}', space=vmem, size = 0x80000, scoped, tag = 'input window, operand 1, single buffered']
    #allocation6 [shape = 's32[1]{0}', space=sflag, size = 0x4, scoped, tag = 'scoped memory for tpu_custom_call.1']
    #allocation7 [shape = 'u8[4096]{0}', space=vmem, size = 0x1000, scoped, tag = 'output window, operand 0, single buffered']
    %8 = vsyncpa [#allocation3], 0
    %9 = vsyncpa [#allocation6], 0
    %10 = vsyncpa [#allocation4], 0
    // Predicated region
    $region2: #{tpu_custom_call.1} parent=1 // pred_check
      _
    $region3: #{tpu_custom_call.1} parent=1 // pred_check_branch
      %12 = sbr.rel (0) target = $region5
    $region4: #{tpu_custom_call.1} parent=1 // pred_region
      %14 = vsyncadd [#allocation3], 0
      %s16 = sshll.u32 %s0, 4
      %s17 = int_to_ptr.hbm [resolvable:$true] %s16
      %s18 = sshll.u32 [#allocation2], 4
      %s19 = int_to_ptr.vmem [resolvable:$true] %s18
      %21 = dma.hbm_to_vmem [thread:$0]  %s17, 1024, %s19, [#allocation3]
    $region5: #{tpu_custom_call.1} parent=1 // pred_fallthru
      _
    // Predicated region
    $region6: #{tpu_custom_call.1} parent=1 // pred_check
      _
    $region7: #{tpu_custom_call.1} parent=1 // pred_check_branch
      %23 = sbr.rel (0) target = $region9
    $region8: #{tpu_custom_call.1} parent=1 // pred_region
      %25 = vsyncadd [#allocation6], 0
      %s26 = sshll.u32 %s1, 4
      %s27 = int_to_ptr.hbm [resolvable:$true] %s26
      %s28 = sshll.u32 [#allocation5], 4
      %s29 = int_to_ptr.vmem [resolvable:$true] %s28
      %34 = dma.hbm_to_vmem [thread:$0]  %s27, 16384, %s29, [#allocation6], 128, 128, 8
    $region9: #{tpu_custom_call.1} parent=1 // pred_fallthru
      _
    // Predicated region
    $region10: #{tpu_custom_call.1} parent=1 // pred_check
      _
    $region11: #{tpu_custom_call.1} parent=1 // pred_check_branch
      %36 = sbr.rel (0) target = $region13
    $region12: #{tpu_custom_call.1} parent=1 // pred_region
      _
    $region13: #{tpu_custom_call.1} parent=1 // pred_fallthru
      _
    // Predicated region
    $region14: #{tpu_custom_call.1} parent=1 // pred_check
      _
    $region15: #{tpu_custom_call.1} parent=1 // pred_check_branch
      %38 = sbr.rel (0) target = $region17
    $region16: #{tpu_custom_call.1} parent=1 // pred_region
      %40 = dma.done [#allocation3], 1024
    $region17: #{tpu_custom_call.1} parent=1 // pred_fallthru
      _
    // Predicated region
    $region18: #{tpu_custom_call.1} parent=1 // pred_check
      _
    $region19: #{tpu_custom_call.1} parent=1 // pred_check_branch
      %42 = sbr.rel (0) target = $region21
    $region20: #{tpu_custom_call.1} parent=1 // pred_region
      %44 = dma.done [#allocation6], 16384
    $region21: #{tpu_custom_call.1} parent=1 // pred_fallthru
      _
    %v45 = vld [vmem:[#allocation2] sm:$0xff]
    %v46 = vld [vmem:[#allocation2 + $0x8] sm:$0xff]
    %v47 = vld [vmem:[#allocation2 + $0x10] sm:$0xff]
    %v48 = vld [vmem:[#allocation2 + $0x18] sm:$0xff]
    %v49 = vld [vmem:[#allocation2 + $0x20] sm:$0xff]
    %v50 = vld [vmem:[#allocation2 + $0x28] sm:$0xff]
    %v51 = vld [vmem:[#allocation2 + $0x30] sm:$0xff]
    %v52 = vld [vmem:[#allocation2 + $0x38] sm:$0xff]
    %v53 = vld [vmem:[#allocation5] sm:$0xff]
    %v54 = vld [vmem:[#allocation5 + $0x8] sm:$0xff]
    %v55 = vld [vmem:[#allocation5 + $0x10] sm:$0xff]
    %v56 = vld [vmem:[#allocation5 + $0x18] sm:$0xff]
    %v57 = vld [vmem:[#allocation5 + $0x20] sm:$0xff]
    %v58 = vld [vmem:[#allocation5 + $0x28] sm:$0xff]
    %v59 = vld [vmem:[#allocation5 + $0x30] sm:$0xff]
    %v60 = vld [vmem:[#allocation5 + $0x38] sm:$0xff]
    %v61 = vld [vmem:[#allocation5 + $0x40] sm:$0xff]
    %v62 = vld [vmem:[#allocation5 + $0x48] sm:$0xff]
    %v63 = vld [vmem:[#allocation5 + $0x50] sm:$0xff]
    %v64 = vld [vmem:[#allocation5 + $0x58] sm:$0xff]
    %v65 = vld [vmem:[#allocation5 + $0x60] sm:$0xff]
    %v66 = vld [vmem:[#allocation5 + $0x68] sm:$0xff]
    %v67 = vld [vmem:[#allocation5 + $0x70] sm:$0xff]
    %v68 = vld [vmem:[#allocation5 + $0x78] sm:$0xff]
    %v69 = vld [vmem:[#allocation5 + $0x80] sm:$0xff]
    %v70 = vld [vmem:[#allocation5 + $0x88] sm:$0xff]
    %v71 = vld [vmem:[#allocation5 + $0x90] sm:$0xff]
    %v72 = vld [vmem:[#allocation5 + $0x98] sm:$0xff]
    %v73 = vld [vmem:[#allocation5 + $0xa0] sm:$0xff]
    %v74 = vld [vmem:[#allocation5 + $0xa8] sm:$0xff]
    %v75 = vld [vmem:[#allocation5 + $0xb0] sm:$0xff]
    %v76 = vld [vmem:[#allocation5 + $0xb8] sm:$0xff]
    %v77 = vld [vmem:[#allocation5 + $0xc0] sm:$0xff]
    %v78 = vld [vmem:[#allocation5 + $0xc8] sm:$0xff]
    %v79 = vld [vmem:[#allocation5 + $0xd0] sm:$0xff]
    %v80 = vld [vmem:[#allocation5 + $0xd8] sm:$0xff]
    %v81 = vld [vmem:[#allocation5 + $0xe0] sm:$0xff]
    %v82 = vld [vmem:[#allocation5 + $0xe8] sm:$0xff]
    %v83 = vld [vmem:[#allocation5 + $0xf0] sm:$0xff]
    %v84 = vld [vmem:[#allocation5 + $0xf8] sm:$0xff]
    %v85 = vld [vmem:[#allocation5 + $0x100] sm:$0xff]
    %v86 = vld [vmem:[#allocation5 + $0x108] sm:$0xff]
    %v87 = vld [vmem:[#allocation5 + $0x110] sm:$0xff]
    %v88 = vld [vmem:[#allocation5 + $0x118] sm:$0xff]
    %v89 = vld [vmem:[#allocation5 + $0x120] sm:$0xff]
    %v90 = vld [vmem:[#allocation5 + $0x128] sm:$0xff]
    %v91 = vld [vmem:[#allocation5 + $0x130] sm:$0xff]
    %v92 = vld [vmem:[#allocation5 + $0x138] sm:$0xff]
    %v93 = vld [vmem:[#allocation5 + $0x140] sm:$0xff]
    %v94 = vld [vmem:[#allocation5 + $0x148] sm:$0xff]
    %v95 = vld [vmem:[#allocation5 + $0x150] sm:$0xff]
    %v96 = vld [vmem:[#allocation5 + $0x158] sm:$0xff]
    %v97 = vld [vmem:[#allocation5 + $0x160] sm:$0xff]
    %v98 = vld [vmem:[#allocation5 + $0x168] sm:$0xff]
    %v99 = vld [vmem:[#allocation5 + $0x170] sm:$0xff]
    %v100 = vld [vmem:[#allocation5 + $0x178] sm:$0xff]
    %v101 = vld [vmem:[#allocation5 + $0x180] sm:$0xff]
    %v102 = vld [vmem:[#allocation5 + $0x188] sm:$0xff]
    %v103 = vld [vmem:[#allocation5 + $0x190] sm:$0xff]
    %v104 = vld [vmem:[#allocation5 + $0x198] sm:$0xff]
    %v105 = vld [vmem:[#allocation5 + $0x1a0] sm:$0xff]
    %v106 = vld [vmem:[#allocation5 + $0x1a8] sm:$0xff]
    %v107 = vld [vmem:[#allocation5 + $0x1b0] sm:$0xff]
    %v108 = vld [vmem:[#allocation5 + $0x1b8] sm:$0xff]
    %v109 = vld [vmem:[#allocation5 + $0x1c0] sm:$0xff]
    %v110 = vld [vmem:[#allocation5 + $0x1c8] sm:$0xff]
    %v111 = vld [vmem:[#allocation5 + $0x1d0] sm:$0xff]
    %v112 = vld [vmem:[#allocation5 + $0x1d8] sm:$0xff]
    %v113 = vld [vmem:[#allocation5 + $0x1e0] sm:$0xff]
    %v114 = vld [vmem:[#allocation5 + $0x1e8] sm:$0xff]
    %v115 = vld [vmem:[#allocation5 + $0x1f0] sm:$0xff]
    %v116 = vld [vmem:[#allocation5 + $0x1f8] sm:$0xff]
    %v117 = vld [vmem:[#allocation5 + $0x200] sm:$0xff]
    %v118 = vld [vmem:[#allocation5 + $0x208] sm:$0xff]
    %v119 = vld [vmem:[#allocation5 + $0x210] sm:$0xff]
    %v120 = vld [vmem:[#allocation5 + $0x218] sm:$0xff]
    %v121 = vld [vmem:[#allocation5 + $0x220] sm:$0xff]
    %v122 = vld [vmem:[#allocation5 + $0x228] sm:$0xff]
    %v123 = vld [vmem:[#allocation5 + $0x230] sm:$0xff]
    %v124 = vld [vmem:[#allocation5 + $0x238] sm:$0xff]
    %v125 = vld [vmem:[#allocation5 + $0x240] sm:$0xff]
    %v126 = vld [vmem:[#allocation5 + $0x248] sm:$0xff]
    %v127 = vld [vmem:[#allocation5 + $0x250] sm:$0xff]
    %v128 = vld [vmem:[#allocation5 + $0x258] sm:$0xff]
    %v129 = vld [vmem:[#allocation5 + $0x260] sm:$0xff]
    %v130 = vld [vmem:[#allocation5 + $0x268] sm:$0xff]
    %v131 = vld [vmem:[#allocation5 + $0x270] sm:$0xff]
    %v132 = vld [vmem:[#allocation5 + $0x278] sm:$0xff]
    %v133 = vld [vmem:[#allocation5 + $0x280] sm:$0xff]
    %v134 = vld [vmem:[#allocation5 + $0x288] sm:$0xff]
    %v135 = vld [vmem:[#allocation5 + $0x290] sm:$0xff]
    %v136 = vld [vmem:[#allocation5 + $0x298] sm:$0xff]
    %v137 = vld [vmem:[#allocation5 + $0x2a0] sm:$0xff]
    %v138 = vld [vmem:[#allocation5 + $0x2a8] sm:$0xff]
    %v139 = vld [vmem:[#allocation5 + $0x2b0] sm:$0xff]
    %v140 = vld [vmem:[#allocation5 + $0x2b8] sm:$0xff]
    %v141 = vld [vmem:[#allocation5 + $0x2c0] sm:$0xff]
    %v142 = vld [vmem:[#allocation5 + $0x2c8] sm:$0xff]
    %v143 = vld [vmem:[#allocation5 + $0x2d0] sm:$0xff]
    %v144 = vld [vmem:[#allocation5 + $0x2d8] sm:$0xff]
    %v145 = vld [vmem:[#allocation5 + $0x2e0] sm:$0xff]
    %v146 = vld [vmem:[#allocation5 + $0x2e8] sm:$0xff]
    %v147 = vld [vmem:[#allocation5 + $0x2f0] sm:$0xff]
    %v148 = vld [vmem:[#allocation5 + $0x2f8] sm:$0xff]
    %v149 = vld [vmem:[#allocation5 + $0x300] sm:$0xff]
    %v150 = vld [vmem:[#allocation5 + $0x308] sm:$0xff]
    %v151 = vld [vmem:[#allocation5 + $0x310] sm:$0xff]
    %v152 = vld [vmem:[#allocation5 + $0x318] sm:$0xff]
    %v153 = vld [vmem:[#allocation5 + $0x320] sm:$0xff]
    %v154 = vld [vmem:[#allocation5 + $0x328] sm:$0xff]
    %v155 = vld [vmem:[#allocation5 + $0x330] sm:$0xff]
    %v156 = vld [vmem:[#allocation5 + $0x338] sm:$0xff]
    %v157 = vld [vmem:[#allocation5 + $0x340] sm:$0xff]
    %v158 = vld [vmem:[#allocation5 + $0x348] sm:$0xff]
    %v159 = vld [vmem:[#allocation5 + $0x350] sm:$0xff]
    %v160 = vld [vmem:[#allocation5 + $0x358] sm:$0xff]
    %v161 = vld [vmem:[#allocation5 + $0x360] sm:$0xff]
    %v162 = vld [vmem:[#allocation5 + $0x368] sm:$0xff]
    %v163 = vld [vmem:[#allocation5 + $0x370] sm:$0xff]
    %v164 = vld [vmem:[#allocation5 + $0x378] sm:$0xff]
    %v165 = vld [vmem:[#allocation5 + $0x380] sm:$0xff]
    %v166 = vld [vmem:[#allocation5 + $0x388] sm:$0xff]
    %v167 = vld [vmem:[#allocation5 + $0x390] sm:$0xff]
    %v168 = vld [vmem:[#allocation5 + $0x398] sm:$0xff]
    %v169 = vld [vmem:[#allocation5 + $0x3a0] sm:$0xff]
    %v170 = vld [vmem:[#allocation5 + $0x3a8] sm:$0xff]
    %v171 = vld [vmem:[#allocation5 + $0x3b0] sm:$0xff]
    %v172 = vld [vmem:[#allocation5 + $0x3b8] sm:$0xff]
    %v173 = vld [vmem:[#allocation5 + $0x3c0] sm:$0xff]
    %v174 = vld [vmem:[#allocation5 + $0x3c8] sm:$0xff]
    %v175 = vld [vmem:[#allocation5 + $0x3d0] sm:$0xff]
    %v176 = vld [vmem:[#allocation5 + $0x3d8] sm:$0xff]
    %v177 = vld [vmem:[#allocation5 + $0x3e0] sm:$0xff]
    %v178 = vld [vmem:[#allocation5 + $0x3e8] sm:$0xff]
    %v179 = vld [vmem:[#allocation5 + $0x3f0] sm:$0xff]
    %v180 = vld [vmem:[#allocation5 + $0x3f8] sm:$0xff]
    %v181 = vld [vmem:[%s2] sm:$0x1]
    %182 = vmatpush.msra.mxu0 %v68
    %183 = vmatpush.msra.mxu0 %v67
    %184 = vmatpush.msra.mxu0 %v66
    %185 = vmatpush.msra.mxu0 %v65
    %186 = vmatpush.msra.mxu0 %v64
    %187 = vmatpush.msra.mxu0 %v63
    %188 = vmatpush.msra.mxu0 %v62
    %189 = vmatpush.msra.mxu0 %v61
    %190 = vmatpush.msra.mxu0 %v60
    %191 = vmatpush.msra.mxu0 %v59
    %192 = vmatpush.msra.mxu0 %v58
    %193 = vmatpush.msra.mxu0 %v57
    %194 = vmatpush.msra.mxu0 %v56
    %195 = vmatpush.msra.mxu0 %v55
    %196 = vmatpush.msra.mxu0 %v54
    %197 = vmatpush.msra.mxu0 %v53
    %198 = vmatmul.f32.gmra.mxu0 %v45
    %v199 = vpop.f32.mrf.mxu0
    %v200 = vadd.f32 0.0, %v199
    %201 = vdwg.mxu0
    %202 = vmatpush.msra.mxu0 %v84
    %203 = vmatpush.msra.mxu0 %v83
    %204 = vmatpush.msra.mxu0 %v82
    %205 = vmatpush.msra.mxu0 %v81
    %206 = vmatpush.msra.mxu0 %v80
    %207 = vmatpush.msra.mxu0 %v79
    %208 = vmatpush.msra.mxu0 %v78
    %209 = vmatpush.msra.mxu0 %v77
    %210 = vmatpush.msra.mxu0 %v76
    %211 = vmatpush.msra.mxu0 %v75
    %212 = vmatpush.msra.mxu0 %v74
    %213 = vmatpush.msra.mxu0 %v73
    %214 = vmatpush.msra.mxu0 %v72
    %215 = vmatpush.msra.mxu0 %v71
    %216 = vmatpush.msra.mxu0 %v70
    %217 = vmatpush.msra.mxu0 %v69
    %218 = vmatmul.f32.gmra.mxu0 %v46
    %v219 = vpop.f32.mrf.mxu0
    %v220 = vadd.f32 %v200, %v219
    %221 = vdwg.mxu0
    %222 = vmatpush.msra.mxu0 %v100
    %223 = vmatpush.msra.mxu0 %v99
    %224 = vmatpush.msra.mxu0 %v98
    %225 = vmatpush.msra.mxu0 %v97
    %226 = vmatpush.msra.mxu0 %v96
    %227 = vmatpush.msra.mxu0 %v95
    %228 = vmatpush.msra.mxu0 %v94
    %229 = vmatpush.msra.mxu0 %v93
    %230 = vmatpush.msra.mxu0 %v92
    %231 = vmatpush.msra.mxu0 %v91
    %232 = vmatpush.msra.mxu0 %v90
    %233 = vmatpush.msra.mxu0 %v89
    %234 = vmatpush.msra.mxu0 %v88
    %235 = vmatpush.msra.mxu0 %v87
    %236 = vmatpush.msra.mxu0 %v86
    %237 = vmatpush.msra.mxu0 %v85
    %238 = vmatmul.f32.gmra.mxu0 %v47
    %v239 = vpop.f32.mrf.mxu0
    %v240 = vadd.f32 %v220, %v239
    %241 = vdwg.mxu0
    %242 = vmatpush.msra.mxu0 %v116
    %243 = vmatpush.msra.mxu0 %v115
    %244 = vmatpush.msra.mxu0 %v114
    %245 = vmatpush.msra.mxu0 %v113
    %246 = vmatpush.msra.mxu0 %v112
    %247 = vmatpush.msra.mxu0 %v111
    %248 = vmatpush.msra.mxu0 %v110
    %249 = vmatpush.msra.mxu0 %v109
    %250 = vmatpush.msra.mxu0 %v108
    %251 = vmatpush.msra.mxu0 %v107
    %252 = vmatpush.msra.mxu0 %v106
    %253 = vmatpush.msra.mxu0 %v105
    %254 = vmatpush.msra.mxu0 %v104
    %255 = vmatpush.msra.mxu0 %v103
    %256 = vmatpush.msra.mxu0 %v102
    %257 = vmatpush.msra.mxu0 %v101
    %258 = vmatmul.f32.gmra.mxu0 %v48
    %v259 = vpop.f32.mrf.mxu0
    %v260 = vadd.f32 %v240, %v259
    %261 = vdwg.mxu0
    %262 = vmatpush.msra.mxu0 %v132
    %263 = vmatpush.msra.mxu0 %v131
    %264 = vmatpush.msra.mxu0 %v130
    %265 = vmatpush.msra.mxu0 %v129
    %266 = vmatpush.msra.mxu0 %v128
    %267 = vmatpush.msra.mxu0 %v127
    %268 = vmatpush.msra.mxu0 %v126
    %269 = vmatpush.msra.mxu0 %v125
    %270 = vmatpush.msra.mxu0 %v124
    %271 = vmatpush.msra.mxu0 %v123
    %272 = vmatpush.msra.mxu0 %v122
    %273 = vmatpush.msra.mxu0 %v121
    %274 = vmatpush.msra.mxu0 %v120
    %275 = vmatpush.msra.mxu0 %v119
    %276 = vmatpush.msra.mxu0 %v118
    %277 = vmatpush.msra.mxu0 %v117
    %278 = vmatmul.f32.gmra.mxu0 %v49
    %v279 = vpop.f32.mrf.mxu0
    %v280 = vadd.f32 %v260, %v279
    %281 = vdwg.mxu0
    %282 = vmatpush.msra.mxu0 %v148
    %283 = vmatpush.msra.mxu0 %v147
    %284 = vmatpush.msra.mxu0 %v146
    %285 = vmatpush.msra.mxu0 %v145
    %286 = vmatpush.msra.mxu0 %v144
    %287 = vmatpush.msra.mxu0 %v143
    %288 = vmatpush.msra.mxu0 %v142
    %289 = vmatpush.msra.mxu0 %v141
    %290 = vmatpush.msra.mxu0 %v140
    %291 = vmatpush.msra.mxu0 %v139
    %292 = vmatpush.msra.mxu0 %v138
    %293 = vmatpush.msra.mxu0 %v137
    %294 = vmatpush.msra.mxu0 %v136
    %295 = vmatpush.msra.mxu0 %v135
    %296 = vmatpush.msra.mxu0 %v134
    %297 = vmatpush.msra.mxu0 %v133
    %298 = vmatmul.f32.gmra.mxu0 %v50
    %v299 = vpop.f32.mrf.mxu0
    %v300 = vadd.f32 %v280, %v299
    %301 = vdwg.mxu0
    %302 = vmatpush.msra.mxu0 %v164
    %303 = vmatpush.msra.mxu0 %v163
    %304 = vmatpush.msra.mxu0 %v162
    %305 = vmatpush.msra.mxu0 %v161
    %306 = vmatpush.msra.mxu0 %v160
    %307 = vmatpush.msra.mxu0 %v159
    %308 = vmatpush.msra.mxu0 %v158
    %309 = vmatpush.msra.mxu0 %v157
    %310 = vmatpush.msra.mxu0 %v156
    %311 = vmatpush.msra.mxu0 %v155
    %312 = vmatpush.msra.mxu0 %v154
    %313 = vmatpush.msra.mxu0 %v153
    %314 = vmatpush.msra.mxu0 %v152
    %315 = vmatpush.msra.mxu0 %v151
    %316 = vmatpush.msra.mxu0 %v150
    %317 = vmatpush.msra.mxu0 %v149
    %318 = vmatmul.f32.gmra.mxu0 %v51
    %v319 = vpop.f32.mrf.mxu0
    %v320 = vadd.f32 %v300, %v319
    %321 = vdwg.mxu0
    %322 = vmatpush.msra.mxu0 %v180
    %323 = vmatpush.msra.mxu0 %v179
    %324 = vmatpush.msra.mxu0 %v178
    %325 = vmatpush.msra.mxu0 %v177
    %326 = vmatpush.msra.mxu0 %v176
    %327 = vmatpush.msra.mxu0 %v175
    %328 = vmatpush.msra.mxu0 %v174
    %329 = vmatpush.msra.mxu0 %v173
    %330 = vmatpush.msra.mxu0 %v172
    %331 = vmatpush.msra.mxu0 %v171
    %332 = vmatpush.msra.mxu0 %v170
    %333 = vmatpush.msra.mxu0 %v169
    %334 = vmatpush.msra.mxu0 %v168
    %335 = vmatpush.msra.mxu0 %v167
    %336 = vmatpush.msra.mxu0 %v166
    %337 = vmatpush.msra.mxu0 %v165
    %338 = vmatmul.f32.gmra.mxu0 %v52
    %v339 = vpop.f32.mrf.mxu0
    %v340 = vadd.f32 %v320, %v339
    %341 = vdwg.mxu0
    %v342 = vmul.f32 %v45, %v45
    %v343 = vmul.f32 %v46, %v46
    %v344 = vmul.f32 %v47, %v47
    %v345 = vmul.f32 %v48, %v48
    %v346 = vmul.f32 %v49, %v49
    %v347 = vmul.f32 %v50, %v50
    %v348 = vmul.f32 %v51, %v51
    %v349 = vmul.f32 %v52, %v52
    %v350 = vadd.f32 %v342, %v343
    %v351 = vadd.f32 %v350, %v344
    %v352 = vadd.f32 %v351, %v345
    %v353 = vadd.f32 %v352, %v346
    %v354 = vadd.f32 %v353, %v347
    %v355 = vadd.f32 %v354, %v348
    %v356 = vadd.f32 %v355, %v349
    %357 = vadd.xlane.f32.xlu0 %v356
    %v358 = vpop.xlane.xlu0 %357
    %v359 = vmul.f32 %v340, 2.0
    %v360 = vsub.f32 %v358, %v359
    %v362 = vperm.slane %v181, 0
    %v364 = vadd.f32 %v360, %v362
    %v365 = vmax.f32 %v364, 0.0
    %v366 = vrsqrt.pop %v365
    %v367 = vmul.f32 %v366, %v365
    %v368 = vmul.f32 %v367, %v366
    %v369 = vmul.f32 0.5, %v368
    %v370 = vsub.f32 1.5, %v369
    %v371 = vmul.f32 %v366, %v370
    %v372 = vmul.f32 %v365, %v371
    %vm373 = vcmp.eq.f32.partialorder %v365, inf
    %v374 = vsel %vm373, %v365, %v372
    %vm375 = vcmp.eq.f32.partialorder %v365, 0.0
    %v376 = vand.u32 %v365, 2147483648
    %v377 = vsel %vm375, %v376, %v374
    %v378 = vadd.f32 %v377, 1.0
    %v379 = vrcp.pop %v378
    %v380 = vmul.f32 %v378, %v379
    %v381 = vsub.f32 1.0, %v380
    %v382 = vmul.f32 %v379, %v381
    %v383 = vadd.f32 %v379, %v382
    %vm384 = vweird.f32 %v378
    %vm385 = vweird.f32 %v379
    %vm386 = vmor %vm384, %vm385
    %v387 = vsel %vm386, %v379, %v383
    %v388 = vand.u32 2147483647, %v378
    %vm389 = vcmp.eq.f32.partialorder %v388, 8.507059e+37
    %v390 = vand.u32 %v378, 2147483648
    %v391 = vor.u32 1.1754944e-38, %v390
    %v392 = vsel %vm389, %v391, %v387
    %v393 = vlaneseq
    %v394 = vand.u32 %v393, 127
    %vm395 = vcmp.lt.s32.totalorder %v394, 10
    %v396 = vsel %vm395, %v392, 0.0
    %397 = vadd.xlane.f32.xlu0 %v396
    %v398 = vpop.xlane.xlu0 %397
    %v399 = vrcp.pop %v398
    %v400 = vmul.f32 %v398, %v399
    %v401 = vsub.f32 1.0, %v400
    %v402 = vmul.f32 %v399, %v401
    %v403 = vadd.f32 %v399, %v402
    %vm404 = vweird.f32 %v398
    %vm405 = vweird.f32 %v399
    %vm406 = vmor %vm404, %vm405
    %v407 = vsel %vm406, %v399, %v403
    %v408 = vand.u32 2147483647, %v398
    %vm409 = vcmp.eq.f32.partialorder %v408, 8.507059e+37
    %v410 = vand.u32 %v398, 2147483648
    %v411 = vor.u32 1.1754944e-38, %v410
    %v412 = vsel %vm409, %v411, %v407
    %v413 = vmul.f32 %v396, %v412
    %414 = vst [vmem:[#allocation7] sm:$0xff] %v413
    // Predicated region
    $region22: #{tpu_custom_call.1} parent=1 // pred_check
      _
    $region23: #{tpu_custom_call.1} parent=1 // pred_check_branch
      %416 = sbr.rel (0) target = $region25
    $region24: #{tpu_custom_call.1} parent=1 // pred_region
      %418 = vsyncadd [#allocation4], 0
      %s420 = sshll.u32 [#allocation7], 4
      %s421 = int_to_ptr.vmem [resolvable:$true] %s420
      %s422 = sshll.u32 %s3, 4
      %s423 = int_to_ptr.hbm [resolvable:$true] %s422
      %425 = dma.vmem_to_hbm [thread:$0]  %s421, 128, %s423, [#allocation4]
    $region25: #{tpu_custom_call.1} parent=1 // pred_fallthru
      _
    // Predicated region
    $region26: #{tpu_custom_call.1} parent=1 // pred_check
      _
    $region27: #{tpu_custom_call.1} parent=1 // pred_check_branch
      %427 = sbr.rel (0) target = $region29
    $region28: #{tpu_custom_call.1} parent=1 // pred_region
      %429 = dma.done [#allocation4], 128
    $region29: #{tpu_custom_call.1} parent=1 // pred_fallthru
      _
    %430 = vsyncpa [#allocation3], 1
    %431 = vsyncpa [#allocation6], 1
    %432 = vsyncpa [#allocation4], 1

</llo_original>
